<compile_context>
chip_gen: v7x
topology: tpu7x:2x2x1
jax: 0.10.0
libtpu: 0.0.40
codegen_flags: <defaults>
</compile_context>

<pallas_src>
import jax
import jax.numpy as jnp
from jax.experimental import pallas as pl
from jax.experimental.pallas import tpu as pltpu


def _round_up(n, m):
    return ((n + m - 1) // m) * m


def mlp_head_kernel(x_ref, w1_ref, b1_ref, w2_ref, b2_ref, w3_ref, b3_ref, o_ref):
    # fc1 + ReLU  (bf16 MXU inputs, f32 accumulate).  astype is a no-op when
    # the producer already feeds bf16 activations.
    x = x_ref[...].astype(jnp.bfloat16)
    h1 = jnp.dot(x, w1_ref[...], preferred_element_type=jnp.float32)
    h1 = jnp.maximum(h1 + b1_ref[...], 0.0)
    # fc2 + ReLU (output dim zero-padded to 128 lanes)
    h2 = jnp.dot(h1.astype(jnp.bfloat16), w2_ref[...],
                 preferred_element_type=jnp.float32)
    h2 = jnp.maximum(h2 + b2_ref[...], 0.0)
    # fc3 (no activation)
    out = jnp.dot(h2.astype(jnp.bfloat16), w3_ref[...],
                  preferred_element_type=jnp.float32)
    o_ref[...] = (out + b3_ref[...]).astype(o_ref.dtype)


def prepare_params(params, *, h2_pad=128):
    """One-time weight prep: bf16 cast + zero-pad fc2 out dim 64 -> 128.

    Padding is mathematically a no-op: padded b2 entries are 0, so the padded
    h2 channels are relu(0)=0, and the matching padded w3 rows are 0.
    """
    w1, b1, w2, b2, w3, b3 = params
    d2 = w2.shape[1]
    if d2 < h2_pad:
        w2 = jnp.pad(w2, ((0, 0), (0, h2_pad - d2)))
        b2 = jnp.pad(b2, ((0, 0), (0, h2_pad - d2)))
        w3 = jnp.pad(w3, ((0, h2_pad - d2), (0, 0)))
    return (w1.astype(jnp.bfloat16), b1.astype(jnp.float32),
            w2.astype(jnp.bfloat16), b2.astype(jnp.float32),
            w3.astype(jnp.bfloat16), b3.astype(jnp.float32))


def mlp_head_regnet_y_1_6gf(x, prepared_params, *, block_b=1024):
    """x: (B, 888) float32 or bfloat16 -> (B, 2) float32."""
    w1, b1, w2, b2, w3, b3 = prepared_params
    B, D = x.shape

    # Batch tile: multiple of 8 sublanes, capped at block_b, and sized so the
    # batch grid has >=2 steps whenever possible (both v7x TCs get work).
    tb = min(block_b, _round_up(pl.cdiv(B, 2), 8))
    grid = (pl.cdiv(B, tb),)  # partial edge block handled by Pallas masking

    const2 = lambda i: (0, 0)  # weights/biases: same block every step -> VMEM-resident

    itemsize = lambda a: a.size * jnp.dtype(a.dtype).itemsize
    flops = 2 * B * (D * w1.shape[1] + w1.shape[1] * w2.shape[1]
                     + w2.shape[1] * w3.shape[1])
    bytes_accessed = (itemsize(x) + sum(itemsize(a) for a in prepared_params)
                      + B * w3.shape[1] * 4)

    out = pl.pallas_call(
        mlp_head_kernel,
        out_shape=jax.ShapeDtypeStruct((B, 2), jnp.float32),
        grid=grid,
        in_specs=[
            pl.BlockSpec((tb, D), lambda i: (i, 0)),      # x tile (pipelined)
            pl.BlockSpec(w1.shape, const2),               # fc1 weight (resident)
            pl.BlockSpec(b1.shape, const2),               # fc1 bias
            pl.BlockSpec(w2.shape, const2),               # fc2 weight
            pl.BlockSpec(b2.shape, const2),               # fc2 bias
            pl.BlockSpec(w3.shape, const2),               # fc3 weight
            pl.BlockSpec(b3.shape, const2),               # fc3 bias
        ],
        out_specs=pl.BlockSpec((tb, 2), lambda i: (i, 0)),
        compiler_params=pltpu.CompilerParams(
            dimension_semantics=("parallel",),            # shard batch across TCs (v7x)
        ),
        cost_estimate=pl.CostEstimate(
            flops=int(flops), bytes_accessed=int(bytes_accessed), transcendentals=0),
    )(x, w1, b1, w2, b2, w3, b3)
    return out


def init_params(key):
    """Deterministic init mimicking nn.Linear default U(-1/sqrt(in), 1/sqrt(in)).
    Weights stored transposed (in, out) so y = x @ W_t + b."""
    dims = [(888, 256), (256, 64), (64, 2)]
    params = []
    keys = jax.random.split(key, 2 * len(dims))
    for i, (din, dout) in enumerate(dims):
        bound = 1.0 / jnp.sqrt(jnp.float32(din))
        w_t = jax.random.uniform(keys[2 * i], (din, dout), jnp.float32,
                                 minval=-bound, maxval=bound)
        b = jax.random.uniform(keys[2 * i + 1], (1, dout), jnp.float32,
                               minval=-bound, maxval=bound)
        params += [w_t, b]
    return tuple(params)


def reference_forward_bf16(x, params):
    """Reference mirroring the kernel's bf16-weight / f32-accumulate math."""
    w1, b1, w2, b2, w3, b3 = params
    bf = jnp.bfloat16
    h1 = jnp.maximum(
        jnp.dot(x.astype(bf), w1.astype(bf), preferred_element_type=jnp.float32) + b1, 0.0)
    h2 = jnp.maximum(
        jnp.dot(h1.astype(bf), w2.astype(bf), preferred_element_type=jnp.float32) + b2, 0.0)
    return jnp.dot(h2.astype(bf), w3.astype(bf), preferred_element_type=jnp.float32) + b3


if __name__ == "__main__":
    key = jax.random.PRNGKey(0)
    k_x, k_p, k_x2 = jax.random.split(key, 3)
    params = init_params(k_p)
    prepped = prepare_params(params)

    # Small-batch f32 check (single grid step).
    B = 8
    x = jax.random.normal(k_x, (B, 888), jnp.float32)
    out = jax.block_until_ready(mlp_head_regnet_y_1_6gf(x, prepped))
    ref = reference_forward_bf16(x, params)
    assert out.shape == (B, 2)
    assert jnp.allclose(out, ref, atol=1e-2, rtol=1e-2), float(jnp.max(jnp.abs(out - ref)))

    # Multi-tile check with a partial edge block and bf16 activations from the
    # "producer" (exercises tb sizing, OOB masking, and weight residency).
    B2 = 72
    x2 = jax.random.normal(k_x2, (B2, 888), jnp.bfloat16)
    out2 = jax.block_until_ready(mlp_head_regnet_y_1_6gf(x2, prepped))
    ref2 = reference_forward_bf16(x2, params)
    assert out2.shape == (B2, 2)
    assert jnp.allclose(out2, ref2, atol=1e-2, rtol=1e-2), float(jnp.max(jnp.abs(out2 - ref2)))

    print("KERNEL_OK")
</pallas_src>

<mosaic_0001>
module attributes {stable_mosaic.version = 11 : i64} {
  func.func @mlp_head_kernel(%arg0: i32, %arg1: memref<8x888xf32, #tpu.memory_space<vmem>>, %arg2: memref<888x256xbf16, #tpu.memory_space<vmem>>, %arg3: memref<1x256xf32, #tpu.memory_space<vmem>>, %arg4: memref<256x128xbf16, #tpu.memory_space<vmem>>, %arg5: memref<1x128xf32, #tpu.memory_space<vmem>>, %arg6: memref<128x2xbf16, #tpu.memory_space<vmem>>, %arg7: memref<1x2xf32, #tpu.memory_space<vmem>>, %arg8: memref<8x2xf32, #tpu.memory_space<vmem>>) attributes {dimension_semantics = [#tpu.dimension_semantics<parallel>], iteration_bounds = array<i64: 1>, scalar_prefetch = 0 : i64, scratch_operands = 0 : i64, tpu.core_type = #tpu.core_type<tc>, window_params = [{transform_indices = @transform_0, window_bounds = array<i64: 8, 888>}, {pipeline_mode = #tpu.pipeline_mode<synchronous>, transform_indices = @transform_1, window_bounds = array<i64: 888, 256>}, {pipeline_mode = #tpu.pipeline_mode<synchronous>, transform_indices = @transform_2, window_bounds = array<i64: 1, 256>}, {pipeline_mode = #tpu.pipeline_mode<synchronous>, transform_indices = @transform_3, window_bounds = array<i64: 256, 128>}, {pipeline_mode = #tpu.pipeline_mode<synchronous>, transform_indices = @transform_4, window_bounds = array<i64: 1, 128>}, {pipeline_mode = #tpu.pipeline_mode<synchronous>, transform_indices = @transform_5, window_bounds = array<i64: 128, 2>}, {pipeline_mode = #tpu.pipeline_mode<synchronous>, transform_indices = @transform_6, window_bounds = array<i64: 1, 2>}, {transform_indices = @transform_7, window_bounds = array<i64: 8, 2>}]} {
    %c0 = arith.constant 0 : index
    %c0_0 = arith.constant 0 : index
    %0 = vector.load %arg1[%c0, %c0_0] : memref<8x888xf32, #tpu.memory_space<vmem>>, vector<8x888xf32>
    %1 = arith.truncf %0 : vector<8x888xf32> to vector<8x888xbf16>
    %c0_1 = arith.constant 0 : index
    %c0_2 = arith.constant 0 : index
    %2 = vector.load %arg2[%c0_1, %c0_2] : memref<888x256xbf16, #tpu.memory_space<vmem>>, vector<888x256xbf16>
    %cst = arith.constant dense<0.000000e+00> : vector<8x256xf32>
    %3 = tpu.matmul %1, %2, %cst {dimension_numbers = #tpu.dot_dimension_numbers<[1], [0], [0], [1], [0, 0, 1, 1], [], []>} : vector<8x888xbf16>, vector<888x256xbf16>, vector<8x256xf32> -> vector<8x256xf32>
    %c0_3 = arith.constant 0 : index
    %c0_4 = arith.constant 0 : index
    %4 = vector.load %arg3[%c0_3, %c0_4] : memref<1x256xf32, #tpu.memory_space<vmem>>, vector<1x256xf32>
    %5 = vector.broadcast %4 : vector<1x256xf32> to vector<8x256xf32>
    %6 = arith.addf %3, %5 : vector<8x256xf32>
    %cst_5 = arith.constant 0.000000e+00 : f32
    %7 = vector.broadcast %cst_5 : f32 to vector<8x256xf32>
    %8 = arith.maximumf %6, %7 : vector<8x256xf32>
    %9 = arith.truncf %8 : vector<8x256xf32> to vector<8x256xbf16>
    %c0_6 = arith.constant 0 : index
    %c0_7 = arith.constant 0 : index
    %10 = vector.load %arg4[%c0_6, %c0_7] : memref<256x128xbf16, #tpu.memory_space<vmem>>, vector<256x128xbf16>
    %cst_8 = arith.constant dense<0.000000e+00> : vector<8x128xf32>
    %11 = tpu.matmul %9, %10, %cst_8 {dimension_numbers = #tpu.dot_dimension_numbers<[1], [0], [0], [1], [0, 0, 1, 1], [], []>} : vector<8x256xbf16>, vector<256x128xbf16>, vector<8x128xf32> -> vector<8x128xf32>
    %c0_9 = arith.constant 0 : index
    %c0_10 = arith.constant 0 : index
    %12 = vector.load %arg5[%c0_9, %c0_10] : memref<1x128xf32, #tpu.memory_space<vmem>>, vector<1x128xf32>
    %13 = vector.broadcast %12 : vector<1x128xf32> to vector<8x128xf32>
    %14 = arith.addf %11, %13 : vector<8x128xf32>
    %cst_11 = arith.constant 0.000000e+00 : f32
    %15 = vector.broadcast %cst_11 : f32 to vector<8x128xf32>
    %16 = arith.maximumf %14, %15 : vector<8x128xf32>
    %17 = arith.truncf %16 : vector<8x128xf32> to vector<8x128xbf16>
    %c0_12 = arith.constant 0 : index
    %c0_13 = arith.constant 0 : index
    %18 = vector.load %arg6[%c0_12, %c0_13] : memref<128x2xbf16, #tpu.memory_space<vmem>>, vector<128x2xbf16>
    %cst_14 = arith.constant dense<0.000000e+00> : vector<8x2xf32>
    %19 = tpu.matmul %17, %18, %cst_14 {dimension_numbers = #tpu.dot_dimension_numbers<[1], [0], [0], [1], [0, 0, 1, 1], [], []>} : vector<8x128xbf16>, vector<128x2xbf16>, vector<8x2xf32> -> vector<8x2xf32>
    %c0_15 = arith.constant 0 : index
    %c0_16 = arith.constant 0 : index
    %20 = vector.load %arg7[%c0_15, %c0_16] : memref<1x2xf32, #tpu.memory_space<vmem>>, vector<1x2xf32>
    %21 = vector.broadcast %20 : vector<1x2xf32> to vector<8x2xf32>
    %22 = arith.addf %19, %21 : vector<8x2xf32>
    %c0_17 = arith.constant 0 : index
    %c0_18 = arith.constant 0 : index
    %23 = vector.load %arg8[%c0_17, %c0_18] : memref<8x2xf32, #tpu.memory_space<vmem>>, vector<8x2xf32>
    tpu.vector_store %arg8[%c0_17, %c0_18], %22 {strides = array<i32>} : memref<8x2xf32, #tpu.memory_space<vmem>>, vector<8x2xf32>,
    return
  }
  func.func @transform_0(%arg0: i32) -> (i32, i32) {
    %c0_i32 = arith.constant 0 : i32
    %c0_i32_0 = arith.constant 0 : i32
    return %arg0, %c0_i32 : i32, i32
  }
  func.func @transform_1(%arg0: i32) -> (i32, i32) {
    %c0_i32 = arith.constant 0 : i32
    %c0_i32_0 = arith.constant 0 : i32
    %c0_i32_1 = arith.constant 0 : i32
    return %c0_i32, %c0_i32_0 : i32, i32
  }
  func.func @transform_2(%arg0: i32) -> (i32, i32) {
    %c0_i32 = arith.constant 0 : i32
    %c0_i32_0 = arith.constant 0 : i32
    %c0_i32_1 = arith.constant 0 : i32
    return %c0_i32, %c0_i32_0 : i32, i32
  }
  func.func @transform_3(%arg0: i32) -> (i32, i32) {
    %c0_i32 = arith.constant 0 : i32
    %c0_i32_0 = arith.constant 0 : i32
    %c0_i32_1 = arith.constant 0 : i32
    return %c0_i32, %c0_i32_0 : i32, i32
  }
  func.func @transform_4(%arg0: i32) -> (i32, i32) {
    %c0_i32 = arith.constant 0 : i32
    %c0_i32_0 = arith.constant 0 : i32
    %c0_i32_1 = arith.constant 0 : i32
    return %c0_i32, %c0_i32_0 : i32, i32
  }
  func.func @transform_5(%arg0: i32) -> (i32, i32) {
    %c0_i32 = arith.constant 0 : i32
    %c0_i32_0 = arith.constant 0 : i32
    %c0_i32_1 = arith.constant 0 : i32
    return %c0_i32, %c0_i32_0 : i32, i32
  }
  func.func @transform_6(%arg0: i32) -> (i32, i32) {
    %c0_i32 = arith.constant 0 : i32
    %c0_i32_0 = arith.constant 0 : i32
    %c0_i32_1 = arith.constant 0 : i32
    return %c0_i32, %c0_i32_0 : i32, i32
  }
  func.func @transform_7(%arg0: i32) -> (i32, i32) {
    %c0_i32 = arith.constant 0 : i32
    %c0_i32_0 = arith.constant 0 : i32
    return %arg0, %c0_i32 : i32, i32
  }
}

</mosaic_0001>

<llo_original>
// kernel: tpu_custom_call.1
$region0: #{tpu_custom_call.1}
  #allocation0 [shape = 'u32[]', space=smem, size = 0x4, offset = 0x4, fixed_abs, tag = 'smem constant byte address 0x4 - core index']
  #allocation1 [shape = 'u32[144,128]{1,0:T(1,128)}', space=vmem, size = 0x12000, scoped, tag = 'internal scratch']
  %s0 = inlined_call_operand.vmem [shape: f32[8,888], index: 0, kind: input, shape index: {}]
  %s1 = inlined_call_operand.hbm [shape: bf16[888,256], index: 1, kind: input, shape index: {}]
  %s2 = inlined_call_operand.vmem [shape: f32[1,256], index: 2, kind: input, shape index: {}]
  %s3 = inlined_call_operand.hbm [shape: bf16[256,128], index: 3, kind: input, shape index: {}]
  %s4 = inlined_call_operand.vmem [shape: f32[1,128], index: 4, kind: input, shape index: {}]
  %s5 = inlined_call_operand.vmem [shape: bf16[128,2], index: 5, kind: input, shape index: {}]
  %s6 = inlined_call_operand.vmem [shape: f32[1,2], index: 6, kind: input, shape index: {}]
  %s7 = inlined_call_operand.vmem [shape: f32[8,2], index: 7, kind: output, shape index: {}]
  %s8 = sld [smem:[#allocation0]]
  $region46: #{tpu_custom_call.1} parent=0
    _
  %s10 = ssub.s32 1, %s8
  %s11 = scalar_select 0, %s10, %s8
  $region1: #{tpu_custom_call.1} parent=0
    #allocation2 [shape = 'u8[454656]{0}', space=vmem, size = 0x6f000, scoped, tag = 'input window, operand 1, single buffered']
    #allocation3 [shape = 's32[1]{0}', space=sflag, size = 0x4, scoped, tag = 'scoped memory for tpu_custom_call.1']
    #allocation4 [shape = 'u8[65536]{0}', space=vmem, size = 0x10000, scoped, tag = 'input window, operand 3, single buffered']
    #allocation5 [shape = 's32[1]{0}', space=sflag, size = 0x4, scoped, tag = 'scoped memory for tpu_custom_call.1']
    %12 = vsyncpa [#allocation3], 0
    %13 = vsyncpa [#allocation5], 0
    // Predicated region
    $region2: #{tpu_custom_call.1} parent=1 // pred_check
      _
    $region3: #{tpu_custom_call.1} parent=1 // pred_check_branch
      %15 = sbr.rel (0) target = $region5
    $region4: #{tpu_custom_call.1} parent=1 // pred_region
      _
    $region5: #{tpu_custom_call.1} parent=1 // pred_fallthru
      _
    // Predicated region
    $region6: #{tpu_custom_call.1} parent=1 // pred_check
      _
    $region7: #{tpu_custom_call.1} parent=1 // pred_check_branch
      %17 = sbr.rel (0) target = $region9
    $region8: #{tpu_custom_call.1} parent=1 // pred_region
      %s19 = ssub.s32 14208, 14208
      %20 = vsyncadd [#allocation3], %s19
      %s21 = sshll.u32 [#allocation2], 4
      %s22 = int_to_ptr.vmem [resolvable:$true] %s21
      %27 = dma.hbm_to_vmem [thread:$0]  %s1, 14208, %s22, [#allocation3], 128, 128, 8
    $region9: #{tpu_custom_call.1} parent=1 // pred_fallthru
      _
    // Predicated region
    $region10: #{tpu_custom_call.1} parent=1 // pred_check
      _
    $region11: #{tpu_custom_call.1} parent=1 // pred_check_branch
      %29 = sbr.rel (0) target = $region13
    $region12: #{tpu_custom_call.1} parent=1 // pred_region
      _
    $region13: #{tpu_custom_call.1} parent=1 // pred_fallthru
      _
    // Predicated region
    $region14: #{tpu_custom_call.1} parent=1 // pred_check
      _
    $region15: #{tpu_custom_call.1} parent=1 // pred_check_branch
      %31 = sbr.rel (0) target = $region17
    $region16: #{tpu_custom_call.1} parent=1 // pred_region
      %s33 = ssub.s32 2048, 2048
      %34 = vsyncadd [#allocation5], %s33
      %s35 = sshll.u32 [#allocation4], 4
      %s36 = int_to_ptr.vmem [resolvable:$true] %s35
      %41 = dma.hbm_to_vmem [thread:$0]  %s3, 2048, %s36, [#allocation5], 64, 64, 4
    $region17: #{tpu_custom_call.1} parent=1 // pred_fallthru
      _
    // Predicated region
    $region18: #{tpu_custom_call.1} parent=1 // pred_check
      _
    $region19: #{tpu_custom_call.1} parent=1 // pred_check_branch
      %43 = sbr.rel (0) target = $region21
    $region20: #{tpu_custom_call.1} parent=1 // pred_region
      _
    $region21: #{tpu_custom_call.1} parent=1 // pred_fallthru
      _
    // Predicated region
    $region22: #{tpu_custom_call.1} parent=1 // pred_check
      _
    $region23: #{tpu_custom_call.1} parent=1 // pred_check_branch
      %45 = sbr.rel (0) target = $region25
    $region24: #{tpu_custom_call.1} parent=1 // pred_region
      _
    $region25: #{tpu_custom_call.1} parent=1 // pred_fallthru
      _
    // Predicated region
    $region26: #{tpu_custom_call.1} parent=1 // pred_check
      _
    $region27: #{tpu_custom_call.1} parent=1 // pred_check_branch
      %47 = sbr.rel (0) target = $region29
    $region28: #{tpu_custom_call.1} parent=1 // pred_region
      _
    $region29: #{tpu_custom_call.1} parent=1 // pred_fallthru
      _
    // Predicated region
    $region30: #{tpu_custom_call.1} parent=1 // pred_check
      _
    $region31: #{tpu_custom_call.1} parent=1 // pred_check_branch
      %49 = sbr.rel (0) target = $region33
    $region32: #{tpu_custom_call.1} parent=1 // pred_region
      %50 = dma.done [#allocation3], 14208
    $region33: #{tpu_custom_call.1} parent=1 // pred_fallthru
      _
    // Predicated region
    $region34: #{tpu_custom_call.1} parent=1 // pred_check
      _
    $region35: #{tpu_custom_call.1} parent=1 // pred_check_branch
      %52 = sbr.rel (0) target = $region37
    $region36: #{tpu_custom_call.1} parent=1 // pred_region
      %53 = dma.done [#allocation5], 2048
    $region37: #{tpu_custom_call.1} parent=1 // pred_fallthru
      _
    %v55 = vld [vmem:[%s0] sm:$0xff]
    %v56 = vld [vmem:[%s0 + $0x8] sm:$0xff]
    %v57 = vld [vmem:[%s0 + $0x10] sm:$0xff]
    %v58 = vld [vmem:[%s0 + $0x18] sm:$0xff]
    %v59 = vld [vmem:[%s0 + $0x20] sm:$0xff]
    %v60 = vld [vmem:[%s0 + $0x28] sm:$0xff]
    %v61 = vld [vmem:[%s0 + $0x30] sm:$0xff]
    %v62 = vpack.c.bf16 %v55, %v55
    %v63 = vpack.c.bf16 %v56, %v56
    %v64 = vpack.c.bf16 %v57, %v57
    %v65 = vpack.c.bf16 %v58, %v58
    %v66 = vpack.c.bf16 %v59, %v59
    %v67 = vpack.c.bf16 %v60, %v60
    %v68 = vpack.c.bf16 %v61, %v61
    %v69 = vld [vmem:[#allocation2] sm:$0xff]
    %v70 = vld [vmem:[#allocation2 + $0x8] sm:$0xff]
    %v71 = vld [vmem:[#allocation2 + $0x10] sm:$0xff]
    %v72 = vld [vmem:[#allocation2 + $0x18] sm:$0xff]
    %v73 = vld [vmem:[#allocation2 + $0x20] sm:$0xff]
    %v74 = vld [vmem:[#allocation2 + $0x28] sm:$0xff]
    %v75 = vld [vmem:[#allocation2 + $0x30] sm:$0xff]
    %v76 = vld [vmem:[#allocation2 + $0x38] sm:$0xff]
    %v77 = vld [vmem:[#allocation2 + $0x40] sm:$0xff]
    %v78 = vld [vmem:[#allocation2 + $0x48] sm:$0xff]
    %v79 = vld [vmem:[#allocation2 + $0x50] sm:$0xff]
    %v80 = vld [vmem:[#allocation2 + $0x58] sm:$0xff]
    %v81 = vld [vmem:[#allocation2 + $0x60] sm:$0xff]
    %v82 = vld [vmem:[#allocation2 + $0x68] sm:$0xff]
    %v83 = vld [vmem:[#allocation2 + $0x70] sm:$0xff]
    %v84 = vld [vmem:[#allocation2 + $0x78] sm:$0xff]
    %v85 = vld [vmem:[#allocation2 + $0x80] sm:$0xff]
    %v86 = vld [vmem:[#allocation2 + $0x88] sm:$0xff]
    %v87 = vld [vmem:[#allocation2 + $0x90] sm:$0xff]
    %v88 = vld [vmem:[#allocation2 + $0x98] sm:$0xff]
    %v89 = vld [vmem:[#allocation2 + $0xa0] sm:$0xff]
    %v90 = vld [vmem:[#allocation2 + $0xa8] sm:$0xff]
    %v91 = vld [vmem:[#allocation2 + $0xb0] sm:$0xff]
    %v92 = vld [vmem:[#allocation2 + $0xb8] sm:$0xff]
    %v93 = vld [vmem:[#allocation2 + $0xc0] sm:$0xff]
    %v94 = vld [vmem:[#allocation2 + $0xc8] sm:$0xff]
    %v95 = vld [vmem:[#allocation2 + $0xd0] sm:$0xff]
    %v96 = vld [vmem:[#allocation2 + $0xd8] sm:$0xff]
    %v97 = vld [vmem:[#allocation2 + $0xe0] sm:$0xff]
    %v98 = vld [vmem:[#allocation2 + $0xe8] sm:$0xff]
    %v99 = vld [vmem:[#allocation2 + $0xf0] sm:$0xff]
    %v100 = vld [vmem:[#allocation2 + $0xf8] sm:$0xff]
    %v101 = vld [vmem:[#allocation2 + $0x100] sm:$0xff]
    %v102 = vld [vmem:[#allocation2 + $0x108] sm:$0xff]
    %v103 = vld [vmem:[#allocation2 + $0x110] sm:$0xff]
    %v104 = vld [vmem:[#allocation2 + $0x118] sm:$0xff]
    %v105 = vld [vmem:[#allocation2 + $0x120] sm:$0xff]
    %v106 = vld [vmem:[#allocation2 + $0x128] sm:$0xff]
    %v107 = vld [vmem:[#allocation2 + $0x130] sm:$0xff]
    %v108 = vld [vmem:[#allocation2 + $0x138] sm:$0xff]
    %v109 = vld [vmem:[#allocation2 + $0x140] sm:$0xff]
    %v110 = vld [vmem:[#allocation2 + $0x148] sm:$0xff]
    %v111 = vld [vmem:[#allocation2 + $0x150] sm:$0xff]
    %v112 = vld [vmem:[#allocation2 + $0x158] sm:$0xff]
    %v113 = vld [vmem:[#allocation2 + $0x160] sm:$0xff]
    %v114 = vld [vmem:[#allocation2 + $0x168] sm:$0xff]
    %v115 = vld [vmem:[#allocation2 + $0x170] sm:$0xff]
    %v116 = vld [vmem:[#allocation2 + $0x178] sm:$0xff]
    %v117 = vld [vmem:[#allocation2 + $0x180] sm:$0xff]
    %v118 = vld [vmem:[#allocation2 + $0x188] sm:$0xff]
    %v119 = vld [vmem:[#allocation2 + $0x190] sm:$0xff]
    %v120 = vld [vmem:[#allocation2 + $0x198] sm:$0xff]
    %v121 = vld [vmem:[#allocation2 + $0x1a0] sm:$0xff]
    %v122 = vld [vmem:[#allocation2 + $0x1a8] sm:$0xff]
    %v123 = vld [vmem:[#allocation2 + $0x1b0] sm:$0xff]
    %v124 = vld [vmem:[#allocation2 + $0x1b8] sm:$0xff]
    %v125 = vld [vmem:[#allocation2 + $0x1c0] sm:$0xff]
    %v126 = vld [vmem:[#allocation2 + $0x1c8] sm:$0xff]
    %v127 = vld [vmem:[#allocation2 + $0x1d0] sm:$0xff]
    %v128 = vld [vmem:[#allocation2 + $0x1d8] sm:$0xff]
    %v129 = vld [vmem:[#allocation2 + $0x1e0] sm:$0xff]
    %v130 = vld [vmem:[#allocation2 + $0x1e8] sm:$0xff]
    %v131 = vld [vmem:[#allocation2 + $0x1f0] sm:$0xff]
    %v132 = vld [vmem:[#allocation2 + $0x1f8] sm:$0xff]
    %v133 = vld [vmem:[#allocation2 + $0x200] sm:$0xff]
    %v134 = vld [vmem:[#allocation2 + $0x208] sm:$0xff]
    %v135 = vld [vmem:[#allocation2 + $0x210] sm:$0xff]
    %v136 = vld [vmem:[#allocation2 + $0x218] sm:$0xff]
    %v137 = vld [vmem:[#allocation2 + $0x220] sm:$0xff]
    %v138 = vld [vmem:[#allocation2 + $0x228] sm:$0xff]
    %v139 = vld [vmem:[#allocation2 + $0x230] sm:$0xff]
    %v140 = vld [vmem:[#allocation2 + $0x238] sm:$0xff]
    %v141 = vld [vmem:[#allocation2 + $0x240] sm:$0xff]
    %v142 = vld [vmem:[#allocation2 + $0x248] sm:$0xff]
    %v143 = vld [vmem:[#allocation2 + $0x250] sm:$0xff]
    %v144 = vld [vmem:[#allocation2 + $0x258] sm:$0xff]
    %v145 = vld [vmem:[#allocation2 + $0x260] sm:$0xff]
    %v146 = vld [vmem:[#allocation2 + $0x268] sm:$0xff]
    %v147 = vld [vmem:[#allocation2 + $0x270] sm:$0xff]
    %v148 = vld [vmem:[#allocation2 + $0x278] sm:$0xff]
    %v149 = vld [vmem:[#allocation2 + $0x280] sm:$0xff]
    %v150 = vld [vmem:[#allocation2 + $0x288] sm:$0xff]
    %v151 = vld [vmem:[#allocation2 + $0x290] sm:$0xff]
    %v152 = vld [vmem:[#allocation2 + $0x298] sm:$0xff]
    %v153 = vld [vmem:[#allocation2 + $0x2a0] sm:$0xff]
    %v154 = vld [vmem:[#allocation2 + $0x2a8] sm:$0xff]
    %v155 = vld [vmem:[#allocation2 + $0x2b0] sm:$0xff]
    %v156 = vld [vmem:[#allocation2 + $0x2b8] sm:$0xff]
    %v157 = vld [vmem:[#allocation2 + $0x2c0] sm:$0xff]
    %v158 = vld [vmem:[#allocation2 + $0x2c8] sm:$0xff]
    %v159 = vld [vmem:[#allocation2 + $0x2d0] sm:$0xff]
    %v160 = vld [vmem:[#allocation2 + $0x2d8] sm:$0xff]
    %v161 = vld [vmem:[#allocation2 + $0x2e0] sm:$0xff]
    %v162 = vld [vmem:[#allocation2 + $0x2e8] sm:$0xff]
    %v163 = vld [vmem:[#allocation2 + $0x2f0] sm:$0xff]
    %v164 = vld [vmem:[#allocation2 + $0x2f8] sm:$0xff]
    %v165 = vld [vmem:[#allocation2 + $0x300] sm:$0xff]
    %v166 = vld [vmem:[#allocation2 + $0x308] sm:$0xff]
    %v167 = vld [vmem:[#allocation2 + $0x310] sm:$0xff]
    %v168 = vld [vmem:[#allocation2 + $0x318] sm:$0xff]
    %v169 = vld [vmem:[#allocation2 + $0x320] sm:$0xff]
    %v170 = vld [vmem:[#allocation2 + $0x328] sm:$0xff]
    %v171 = vld [vmem:[#allocation2 + $0x330] sm:$0xff]
    %v172 = vld [vmem:[#allocation2 + $0x338] sm:$0xff]
    %v173 = vld [vmem:[#allocation2 + $0x340] sm:$0xff]
    %v174 = vld [vmem:[#allocation2 + $0x348] sm:$0xff]
    %v175 = vld [vmem:[#allocation2 + $0x350] sm:$0xff]
    %v176 = vld [vmem:[#allocation2 + $0x358] sm:$0xff]
    %v177 = vld [vmem:[#allocation2 + $0x360] sm:$0xff]
    %v178 = vld [vmem:[#allocation2 + $0x368] sm:$0xff]
    %v179 = vld [vmem:[#allocation2 + $0x370] sm:$0xff]
    %v180 = vld [vmem:[%s2] sm:$0x3]
    %v182 = vlaneseq
    %v183 = vshrl.u32 %v182, 7
    %v184 = vsub.s32 0, %v183
    %v185 = vrot.slane %v180, %v184
    %v186 = vlaneseq
    %v187 = vshrl.u32 %v186, 7
    %v188 = vsub.s32 1, %v187
    %v189 = vrot.slane %v180, %v188
    %v303 = vunpack.c.l.b16 %v69
    %v304 = vunpack.c.h.b16 %v69
    %v305 = vunpack.c.l.b16 %v70
    %v306 = vunpack.c.h.b16 %v70
    %v307 = vunpack.c.l.b16 %v71
    %v308 = vunpack.c.h.b16 %v71
    %v309 = vunpack.c.l.b16 %v72
    %v310 = vunpack.c.h.b16 %v72
    %v311 = vunpack.c.l.b16 %v73
    %v312 = vunpack.c.h.b16 %v73
    %v313 = vunpack.c.l.b16 %v74
    %v314 = vunpack.c.h.b16 %v74
    %v315 = vunpack.c.l.b16 %v75
    %v316 = vunpack.c.h.b16 %v75
    %v317 = vunpack.c.l.b16 %v76
    %v318 = vunpack.c.h.b16 %v76
    %v319 = vunpack.c.l.b16 %v77
    %v320 = vunpack.c.h.b16 %v77
    %v321 = vunpack.c.l.b16 %v78
    %v322 = vunpack.c.h.b16 %v78
    %v323 = vunpack.c.l.b16 %v79
    %v324 = vunpack.c.h.b16 %v79
    %v325 = vunpack.c.l.b16 %v80
    %v326 = vunpack.c.h.b16 %v80
    %v327 = vunpack.c.l.b16 %v81
    %v328 = vunpack.c.h.b16 %v81
    %v329 = vunpack.c.l.b16 %v82
    %v330 = vunpack.c.h.b16 %v82
    %v331 = vunpack.c.l.b16 %v83
    %v332 = vunpack.c.h.b16 %v83
    %v333 = vunpack.c.l.b16 %v84
    %v334 = vunpack.c.h.b16 %v84
    %v335 = vunpack.c.l.b16 %v85
    %v336 = vunpack.c.h.b16 %v85
    %v337 = vunpack.c.l.b16 %v86
    %v338 = vunpack.c.h.b16 %v86
    %v339 = vunpack.c.l.b16 %v87
    %v340 = vunpack.c.h.b16 %v87
    %v341 = vunpack.c.l.b16 %v88
    %v342 = vunpack.c.h.b16 %v88
    %v343 = vunpack.c.l.b16 %v89
    %v344 = vunpack.c.h.b16 %v89
    %v345 = vunpack.c.l.b16 %v90
    %v346 = vunpack.c.h.b16 %v90
    %v347 = vunpack.c.l.b16 %v91
    %v348 = vunpack.c.h.b16 %v91
    %v349 = vunpack.c.l.b16 %v92
    %v350 = vunpack.c.h.b16 %v92
    %v351 = vunpack.c.l.b16 %v93
    %v352 = vunpack.c.h.b16 %v93
    %v353 = vunpack.c.l.b16 %v94
    %v354 = vunpack.c.h.b16 %v94
    %v355 = vunpack.c.l.b16 %v95
    %v356 = vunpack.c.h.b16 %v95
    %v357 = vunpack.c.l.b16 %v96
    %v358 = vunpack.c.h.b16 %v96
    %v359 = vunpack.c.l.b16 %v97
    %v360 = vunpack.c.h.b16 %v97
    %v361 = vunpack.c.l.b16 %v98
    %v362 = vunpack.c.h.b16 %v98
    %v363 = vunpack.c.l.b16 %v99
    %v364 = vunpack.c.h.b16 %v99
    %v365 = vunpack.c.l.b16 %v100
    %v366 = vunpack.c.h.b16 %v100
    %v367 = vunpack.c.l.b16 %v101
    %v368 = vunpack.c.h.b16 %v101
    %v369 = vunpack.c.l.b16 %v102
    %v370 = vunpack.c.h.b16 %v102
    %v371 = vunpack.c.l.b16 %v103
    %v372 = vunpack.c.h.b16 %v103
    %v373 = vunpack.c.l.b16 %v104
    %v374 = vunpack.c.h.b16 %v104
    %v375 = vunpack.c.l.b16 %v105
    %v376 = vunpack.c.h.b16 %v105
    %v377 = vunpack.c.l.b16 %v106
    %v378 = vunpack.c.h.b16 %v106
    %v379 = vunpack.c.l.b16 %v107
    %v380 = vunpack.c.h.b16 %v107
    %v381 = vunpack.c.l.b16 %v108
    %v382 = vunpack.c.h.b16 %v108
    %v383 = vunpack.c.l.b16 %v109
    %v384 = vunpack.c.h.b16 %v109
    %v385 = vunpack.c.l.b16 %v110
    %v386 = vunpack.c.h.b16 %v110
    %v387 = vunpack.c.l.b16 %v111
    %v388 = vunpack.c.h.b16 %v111
    %v389 = vunpack.c.l.b16 %v112
    %v390 = vunpack.c.h.b16 %v112
    %v391 = vunpack.c.l.b16 %v113
    %v392 = vunpack.c.h.b16 %v113
    %v393 = vunpack.c.l.b16 %v114
    %v394 = vunpack.c.h.b16 %v114
    %v395 = vunpack.c.l.b16 %v115
    %v396 = vunpack.c.h.b16 %v115
    %v397 = vunpack.c.l.b16 %v116
    %v398 = vunpack.c.h.b16 %v116
    %v399 = vunpack.c.l.b16 %v117
    %v400 = vunpack.c.h.b16 %v117
    %v401 = vunpack.c.l.b16 %v118
    %v402 = vunpack.c.h.b16 %v118
    %v403 = vunpack.c.l.b16 %v119
    %v404 = vunpack.c.h.b16 %v119
    %v405 = vunpack.c.l.b16 %v120
    %v406 = vunpack.c.h.b16 %v120
    %v407 = vunpack.c.l.b16 %v121
    %v408 = vunpack.c.h.b16 %v121
    %v409 = vunpack.c.l.b16 %v122
    %v410 = vunpack.c.h.b16 %v122
    %v411 = vunpack.c.l.b16 %v123
    %v412 = vunpack.c.h.b16 %v123
    %v413 = vunpack.c.l.b16 %v124
    %v414 = vunpack.c.h.b16 %v124
    %v415 = vunpack.c.l.b16 %v125
    %v416 = vunpack.c.h.b16 %v125
    %v417 = vunpack.c.l.b16 %v126
    %v418 = vunpack.c.h.b16 %v126
    %v419 = vunpack.c.l.b16 %v127
    %v420 = vunpack.c.h.b16 %v127
    %v421 = vunpack.c.l.b16 %v128
    %v422 = vunpack.c.h.b16 %v128
    %v423 = vunpack.c.l.b16 %v129
    %v424 = vunpack.c.h.b16 %v129
    %v425 = vunpack.c.l.b16 %v130
    %v426 = vunpack.c.h.b16 %v130
    %v427 = vunpack.c.l.b16 %v131
    %v428 = vunpack.c.h.b16 %v131
    %v429 = vunpack.c.l.b16 %v132
    %v430 = vunpack.c.h.b16 %v132
    %v431 = vunpack.c.l.b16 %v133
    %v432 = vunpack.c.h.b16 %v133
    %v433 = vunpack.c.l.b16 %v134
    %v434 = vunpack.c.h.b16 %v134
    %v435 = vunpack.c.l.b16 %v135
    %v436 = vunpack.c.h.b16 %v135
    %v437 = vunpack.c.l.b16 %v136
    %v438 = vunpack.c.h.b16 %v136
    %v439 = vunpack.c.l.b16 %v137
    %v440 = vunpack.c.h.b16 %v137
    %v441 = vunpack.c.l.b16 %v138
    %v442 = vunpack.c.h.b16 %v138
    %v443 = vunpack.c.l.b16 %v139
    %v444 = vunpack.c.h.b16 %v139
    %v445 = vunpack.c.l.b16 %v140
    %v446 = vunpack.c.h.b16 %v140
    %v447 = vunpack.c.l.b16 %v141
    %v448 = vunpack.c.h.b16 %v141
    %v449 = vunpack.c.l.b16 %v142
    %v450 = vunpack.c.h.b16 %v142
    %v451 = vunpack.c.l.b16 %v143
    %v452 = vunpack.c.h.b16 %v143
    %v453 = vunpack.c.l.b16 %v144
    %v454 = vunpack.c.h.b16 %v144
    %v455 = vunpack.c.l.b16 %v145
    %v456 = vunpack.c.h.b16 %v145
    %v457 = vunpack.c.l.b16 %v146
    %v458 = vunpack.c.h.b16 %v146
    %v459 = vunpack.c.l.b16 %v147
    %v460 = vunpack.c.h.b16 %v147
    %v461 = vunpack.c.l.b16 %v148
    %v462 = vunpack.c.h.b16 %v148
    %v463 = vunpack.c.l.b16 %v149
    %v464 = vunpack.c.h.b16 %v149
    %v465 = vunpack.c.l.b16 %v150
    %v466 = vunpack.c.h.b16 %v150
    %v467 = vunpack.c.l.b16 %v151
    %v468 = vunpack.c.h.b16 %v151
    %v469 = vunpack.c.l.b16 %v152
    %v470 = vunpack.c.h.b16 %v152
    %v471 = vunpack.c.l.b16 %v153
    %v472 = vunpack.c.h.b16 %v153
    %v473 = vunpack.c.l.b16 %v154
    %v474 = vunpack.c.h.b16 %v154
    %v475 = vunpack.c.l.b16 %v155
    %v476 = vunpack.c.h.b16 %v155
    %v477 = vunpack.c.l.b16 %v156
    %v478 = vunpack.c.h.b16 %v156
    %v479 = vunpack.c.l.b16 %v157
    %v480 = vunpack.c.h.b16 %v157
    %v481 = vunpack.c.l.b16 %v158
    %v482 = vunpack.c.h.b16 %v158
    %v483 = vunpack.c.l.b16 %v159
    %v484 = vunpack.c.h.b16 %v159
    %v485 = vunpack.c.l.b16 %v160
    %v486 = vunpack.c.h.b16 %v160
    %v487 = vunpack.c.l.b16 %v161
    %v488 = vunpack.c.h.b16 %v161
    %v489 = vunpack.c.l.b16 %v162
    %v490 = vunpack.c.h.b16 %v162
    %v491 = vunpack.c.l.b16 %v163
    %v492 = vunpack.c.h.b16 %v163
    %v493 = vunpack.c.l.b16 %v164
    %v494 = vunpack.c.h.b16 %v164
    %v495 = vunpack.c.l.b16 %v165
    %v496 = vunpack.c.h.b16 %v165
    %v497 = vunpack.c.l.b16 %v166
    %v498 = vunpack.c.h.b16 %v166
    %v499 = vunpack.c.l.b16 %v167
    %v500 = vunpack.c.h.b16 %v167
    %v501 = vunpack.c.l.b16 %v168
    %v502 = vunpack.c.h.b16 %v168
    %v503 = vunpack.c.l.b16 %v169
    %v504 = vunpack.c.h.b16 %v169
    %v505 = vunpack.c.l.b16 %v170
    %v506 = vunpack.c.h.b16 %v170
    %v507 = vunpack.c.l.b16 %v171
    %v508 = vunpack.c.h.b16 %v171
    %v509 = vunpack.c.l.b16 %v172
    %v510 = vunpack.c.h.b16 %v172
    %v511 = vunpack.c.l.b16 %v173
    %v512 = vunpack.c.h.b16 %v173
    %v513 = vunpack.c.l.b16 %v174
    %v514 = vunpack.c.h.b16 %v174
    %v515 = vunpack.c.l.b16 %v175
    %v516 = vunpack.c.h.b16 %v175
    %v517 = vunpack.c.l.b16 %v176
    %v518 = vunpack.c.h.b16 %v176
    %v519 = vunpack.c.l.b16 %v177
    %v520 = vunpack.c.h.b16 %v177
    %v521 = vunpack.c.l.b16 %v178
    %v522 = vunpack.c.h.b16 %v178
    %v523 = vunpack.c.l.b16 %v179
    %v524 = vunpack.c.h.b16 %v179
    %v525 = vpack.c.b16 %v305, %v303
    %v526 = vpack.c.b16 %v306, %v304
    %v527 = vpack.c.b16 %v309, %v307
    %v528 = vpack.c.b16 %v310, %v308
    %v529 = vpack.c.b16 %v313, %v311
    %v530 = vpack.c.b16 %v314, %v312
    %v531 = vpack.c.b16 %v317, %v315
    %v532 = vpack.c.b16 %v318, %v316
    %v533 = vpack.c.b16 %v321, %v319
    %v534 = vpack.c.b16 %v322, %v320
    %v535 = vpack.c.b16 %v325, %v323
    %v536 = vpack.c.b16 %v326, %v324
    %v537 = vpack.c.b16 %v329, %v327
    %v538 = vpack.c.b16 %v330, %v328
    %v539 = vpack.c.b16 %v333, %v331
    %v540 = vpack.c.b16 %v334, %v332
    %v541 = vpack.c.b16 %v337, %v335
    %v542 = vpack.c.b16 %v338, %v336
    %v543 = vpack.c.b16 %v341, %v339
    %v544 = vpack.c.b16 %v342, %v340
    %v545 = vpack.c.b16 %v345, %v343
    %v546 = vpack.c.b16 %v346, %v344
    %v547 = vpack.c.b16 %v349, %v347
    %v548 = vpack.c.b16 %v350, %v348
    %v549 = vpack.c.b16 %v353, %v351
    %v550 = vpack.c.b16 %v354, %v352
    %v551 = vpack.c.b16 %v357, %v355
    %v552 = vpack.c.b16 %v358, %v356
    %v553 = vpack.c.b16 %v361, %v359
    %v554 = vpack.c.b16 %v362, %v360
    %v555 = vpack.c.b16 %v365, %v363
    %v556 = vpack.c.b16 %v366, %v364
    %v557 = vpack.c.b16 %v369, %v367
    %v558 = vpack.c.b16 %v370, %v368
    %v559 = vpack.c.b16 %v373, %v371
    %v560 = vpack.c.b16 %v374, %v372
    %v561 = vpack.c.b16 %v377, %v375
    %v562 = vpack.c.b16 %v378, %v376
    %v563 = vpack.c.b16 %v381, %v379
    %v564 = vpack.c.b16 %v382, %v380
    %v565 = vpack.c.b16 %v385, %v383
    %v566 = vpack.c.b16 %v386, %v384
    %v567 = vpack.c.b16 %v389, %v387
    %v568 = vpack.c.b16 %v390, %v388
    %v569 = vpack.c.b16 %v393, %v391
    %v570 = vpack.c.b16 %v394, %v392
    %v571 = vpack.c.b16 %v397, %v395
    %v572 = vpack.c.b16 %v398, %v396
    %v573 = vpack.c.b16 %v401, %v399
    %v574 = vpack.c.b16 %v402, %v400
    %v575 = vpack.c.b16 %v405, %v403
    %v576 = vpack.c.b16 %v406, %v404
    %v577 = vpack.c.b16 %v409, %v407
    %v578 = vpack.c.b16 %v410, %v408
    %v579 = vpack.c.b16 %v413, %v411
    %v580 = vpack.c.b16 %v414, %v412
    %v581 = vpack.c.b16 %v417, %v415
    %v582 = vpack.c.b16 %v418, %v416
    %v583 = vpack.c.b16 %v421, %v419
    %v584 = vpack.c.b16 %v422, %v420
    %v585 = vpack.c.b16 %v425, %v423
    %v586 = vpack.c.b16 %v426, %v424
    %v587 = vpack.c.b16 %v429, %v427
    %v588 = vpack.c.b16 %v430, %v428
    %v589 = vpack.c.b16 %v433, %v431
    %v590 = vpack.c.b16 %v434, %v432
    %v591 = vpack.c.b16 %v437, %v435
    %v592 = vpack.c.b16 %v438, %v436
    %v593 = vpack.c.b16 %v441, %v439
    %v594 = vpack.c.b16 %v442, %v440
    %v595 = vpack.c.b16 %v445, %v443
    %v596 = vpack.c.b16 %v446, %v444
    %v597 = vpack.c.b16 %v449, %v447
    %v598 = vpack.c.b16 %v450, %v448
    %v599 = vpack.c.b16 %v453, %v451
    %v600 = vpack.c.b16 %v454, %v452
    %v601 = vpack.c.b16 %v457, %v455
    %v602 = vpack.c.b16 %v458, %v456
    %v603 = vpack.c.b16 %v461, %v459
    %v604 = vpack.c.b16 %v462, %v460
    %v605 = vpack.c.b16 %v465, %v463
    %v606 = vpack.c.b16 %v466, %v464
    %v607 = vpack.c.b16 %v469, %v467
    %v608 = vpack.c.b16 %v470, %v468
    %v609 = vpack.c.b16 %v473, %v471
    %v610 = vpack.c.b16 %v474, %v472
    %v611 = vpack.c.b16 %v477, %v475
    %v612 = vpack.c.b16 %v478, %v476
    %v613 = vpack.c.b16 %v481, %v479
    %v614 = vpack.c.b16 %v482, %v480
    %v615 = vpack.c.b16 %v485, %v483
    %v616 = vpack.c.b16 %v486, %v484
    %v617 = vpack.c.b16 %v489, %v487
    %v618 = vpack.c.b16 %v490, %v488
    %v619 = vpack.c.b16 %v493, %v491
    %v620 = vpack.c.b16 %v494, %v492
    %v621 = vpack.c.b16 %v497, %v495
    %v622 = vpack.c.b16 %v498, %v496
    %v623 = vpack.c.b16 %v501, %v499
    %v624 = vpack.c.b16 %v502, %v500
    %v625 = vpack.c.b16 %v505, %v503
    %v626 = vpack.c.b16 %v506, %v504
    %v627 = vpack.c.b16 %v509, %v507
    %v628 = vpack.c.b16 %v510, %v508
    %v629 = vpack.c.b16 %v513, %v511
    %v630 = vpack.c.b16 %v514, %v512
    %v631 = vpack.c.b16 %v517, %v515
    %v632 = vpack.c.b16 %v518, %v516
    %v633 = vpack.c.b16 %v521, %v519
    %v634 = vpack.c.b16 %v522, %v520
    %v635 = vpack.c.b16 %v523, %v523
    %v636 = vpack.c.b16 %v524, %v524
    %vm747 = vcmask 982016
    %v749 = vsel %vm747, %v68, 0
    %vm751 = vcmask 1043456
    %v753 = vsel %vm751, %v635, 0
    %v756 = vsel %vm751, %v636, 0
    %758 = vmatprep.subr.bf16.mxu0 %v526
    %759 = vmatpush1.bf16.msra.mxu0 %v525
    %760 = vmatprep.subr.bf16.mxu0 %v528
    %761 = vmatpush1.bf16.msra.mxu0 %v527
    %762 = vmatprep.subr.bf16.mxu0 %v530
    %763 = vmatpush1.bf16.msra.mxu0 %v529
    %764 = vmatprep.subr.bf16.mxu0 %v532
    %765 = vmatpush1.bf16.msra.mxu0 %v531
    %766 = vmatprep.subr.bf16.mxu0 %v534
    %767 = vmatpush1.bf16.msra.mxu0 %v533
    %768 = vmatprep.subr.bf16.mxu0 %v536
    %769 = vmatpush1.bf16.msra.mxu0 %v535
    %770 = vmatprep.subr.bf16.mxu0 %v538
    %771 = vmatpush1.bf16.msra.mxu0 %v537
    %772 = vmatprep.subr.bf16.mxu0 %v540
    %773 = vmatpush1.bf16.msra.mxu0 %v539
    %774 = vmatprep.subr.bf16.mxu0 %v542
    %775 = vmatpush1.bf16.msra.mxu0 %v541
    %776 = vmatprep.subr.bf16.mxu0 %v544
    %777 = vmatpush1.bf16.msra.mxu0 %v543
    %778 = vmatprep.subr.bf16.mxu0 %v546
    %779 = vmatpush1.bf16.msra.mxu0 %v545
    %780 = vmatprep.subr.bf16.mxu0 %v548
    %781 = vmatpush1.bf16.msra.mxu0 %v547
    %782 = vmatprep.subr.bf16.mxu0 %v550
    %783 = vmatpush1.bf16.msra.mxu0 %v549
    %784 = vmatprep.subr.bf16.mxu0 %v552
    %785 = vmatpush1.bf16.msra.mxu0 %v551
    %786 = vmatprep.subr.bf16.mxu0 %v554
    %787 = vmatpush1.bf16.msra.mxu0 %v553
    %788 = vmatprep.subr.bf16.mxu0 %v556
    %789 = vmatpush1.bf16.msra.mxu0 %v555
    %790 = vmatprep.mubr.bf16.mxu0 %v63
    %791 = vmatmul.mubr.bf16.gmra.mrb[0].mxu0 %v62
    %v792 = vpop.f32.mrb[0].mxu0
    %v793 = vadd.f32 %v185, %v792
    %v794 = vpop.f32.mrb[0].mxu0
    %v795 = vadd.f32 %v189, %v794
    %v796 = vpop.f32.mrb[0].mxu0
    %v797 = vpop.f32.mrb[0].mxu0
    %798 = vdwg.mxu0
    %799 = vmatprep.subr.bf16.mxu0 %v558
    %800 = vmatpush1.bf16.msra.mxu0 %v557
    %801 = vmatprep.subr.bf16.mxu0 %v560
    %802 = vmatpush1.bf16.msra.mxu0 %v559
    %803 = vmatprep.subr.bf16.mxu0 %v562
    %804 = vmatpush1.bf16.msra.mxu0 %v561
    %805 = vmatprep.subr.bf16.mxu0 %v564
    %806 = vmatpush1.bf16.msra.mxu0 %v563
    %807 = vmatprep.subr.bf16.mxu0 %v566
    %808 = vmatpush1.bf16.msra.mxu0 %v565
    %809 = vmatprep.subr.bf16.mxu0 %v568
    %810 = vmatpush1.bf16.msra.mxu0 %v567
    %811 = vmatprep.subr.bf16.mxu0 %v570
    %812 = vmatpush1.bf16.msra.mxu0 %v569
    %813 = vmatprep.subr.bf16.mxu0 %v572
    %814 = vmatpush1.bf16.msra.mxu0 %v571
    %815 = vmatprep.subr.bf16.mxu0 %v574
    %816 = vmatpush1.bf16.msra.mxu0 %v573
    %817 = vmatprep.subr.bf16.mxu0 %v576
    %818 = vmatpush1.bf16.msra.mxu0 %v575
    %819 = vmatprep.subr.bf16.mxu0 %v578
    %820 = vmatpush1.bf16.msra.mxu0 %v577
    %821 = vmatprep.subr.bf16.mxu0 %v580
    %822 = vmatpush1.bf16.msra.mxu0 %v579
    %823 = vmatprep.subr.bf16.mxu0 %v582
    %824 = vmatpush1.bf16.msra.mxu0 %v581
    %825 = vmatprep.subr.bf16.mxu0 %v584
    %826 = vmatpush1.bf16.msra.mxu0 %v583
    %827 = vmatprep.subr.bf16.mxu0 %v586
    %828 = vmatpush1.bf16.msra.mxu0 %v585
    %829 = vmatprep.subr.bf16.mxu0 %v588
    %830 = vmatpush1.bf16.msra.mxu0 %v587
    %831 = vmatprep.mubr.bf16.mxu0 %v65
    %832 = vmatmul.mubr.bf16.gmra.mrb[0].mxu0 %v64
    %v833 = vpop.f32.mrb[0].mxu0
    %v834 = vadd.f32 %v793, %v833
    %v835 = vpop.f32.mrb[0].mxu0
    %v836 = vadd.f32 %v795, %v835
    %v837 = vpop.f32.mrb[0].mxu0
    %v838 = vpop.f32.mrb[0].mxu0
    %839 = vdwg.mxu0
    %840 = vmatprep.subr.bf16.mxu0 %v590
    %841 = vmatpush1.bf16.msra.mxu0 %v589
    %842 = vmatprep.subr.bf16.mxu0 %v592
    %843 = vmatpush1.bf16.msra.mxu0 %v591
    %844 = vmatprep.subr.bf16.mxu0 %v594
    %845 = vmatpush1.bf16.msra.mxu0 %v593
    %846 = vmatprep.subr.bf16.mxu0 %v596
    %847 = vmatpush1.bf16.msra.mxu0 %v595
    %848 = vmatprep.subr.bf16.mxu0 %v598
    %849 = vmatpush1.bf16.msra.mxu0 %v597
    %850 = vmatprep.subr.bf16.mxu0 %v600
    %851 = vmatpush1.bf16.msra.mxu0 %v599
    %852 = vmatprep.subr.bf16.mxu0 %v602
    %853 = vmatpush1.bf16.msra.mxu0 %v601
    %854 = vmatprep.subr.bf16.mxu0 %v604
    %855 = vmatpush1.bf16.msra.mxu0 %v603
    %856 = vmatprep.subr.bf16.mxu0 %v606
    %857 = vmatpush1.bf16.msra.mxu0 %v605
    %858 = vmatprep.subr.bf16.mxu0 %v608
    %859 = vmatpush1.bf16.msra.mxu0 %v607
    %860 = vmatprep.subr.bf16.mxu0 %v610
    %861 = vmatpush1.bf16.msra.mxu0 %v609
    %862 = vmatprep.subr.bf16.mxu0 %v612
    %863 = vmatpush1.bf16.msra.mxu0 %v611
    %864 = vmatprep.subr.bf16.mxu0 %v614
    %865 = vmatpush1.bf16.msra.mxu0 %v613
    %866 = vmatprep.subr.bf16.mxu0 %v616
    %867 = vmatpush1.bf16.msra.mxu0 %v615
    %868 = vmatprep.subr.bf16.mxu0 %v618
    %869 = vmatpush1.bf16.msra.mxu0 %v617
    %870 = vmatprep.subr.bf16.mxu0 %v620
    %871 = vmatpush1.bf16.msra.mxu0 %v619
    %872 = vmatprep.mubr.bf16.mxu0 %v67
    %873 = vmatmul.mubr.bf16.gmra.mrb[0].mxu0 %v66
    %v874 = vpop.f32.mrb[0].mxu0
    %v875 = vadd.f32 %v834, %v874
    %v876 = vpop.f32.mrb[0].mxu0
    %v877 = vadd.f32 %v836, %v876
    %v878 = vpop.f32.mrb[0].mxu0
    %v879 = vpop.f32.mrb[0].mxu0
    %880 = vdwg.mxu0
    %881 = vmatprep.subr.bf16.mxu0 %v622
    %882 = vmatpush1.bf16.msra.mxu0 %v621
    %883 = vmatprep.subr.bf16.mxu0 %v624
    %884 = vmatpush1.bf16.msra.mxu0 %v623
    %885 = vmatprep.subr.bf16.mxu0 %v626
    %886 = vmatpush1.bf16.msra.mxu0 %v625
    %887 = vmatprep.subr.bf16.mxu0 %v628
    %888 = vmatpush1.bf16.msra.mxu0 %v627
    %889 = vmatprep.subr.bf16.mxu0 %v630
    %890 = vmatpush1.bf16.msra.mxu0 %v629
    %891 = vmatprep.subr.bf16.mxu0 %v632
    %892 = vmatpush1.bf16.msra.mxu0 %v631
    %893 = vmatprep.subr.bf16.mxu0 %v634
    %894 = vmatpush1.bf16.msra.mxu0 %v633
    %895 = vmatprep.subr.bf16.mxu0 %v756
    %896 = vmatpush1.bf16.msra.mxu0 %v753
    %897 = vmatprep.subr.bf16.mxu0 0
    %898 = vmatpush1.bf16.msra.mxu0 0
    %899 = vmatprep.subr.bf16.mxu0 0
    %900 = vmatpush1.bf16.msra.mxu0 0
    %901 = vmatprep.subr.bf16.mxu0 0
    %902 = vmatpush1.bf16.msra.mxu0 0
    %903 = vmatprep.subr.bf16.mxu0 0
    %904 = vmatpush1.bf16.msra.mxu0 0
    %905 = vmatprep.subr.bf16.mxu0 0
    %906 = vmatpush1.bf16.msra.mxu0 0
    %907 = vmatprep.subr.bf16.mxu0 0
    %908 = vmatpush1.bf16.msra.mxu0 0
    %909 = vmatprep.subr.bf16.mxu0 0
    %910 = vmatpush1.bf16.msra.mxu0 0
    %911 = vmatprep.subr.bf16.mxu0 0
    %912 = vmatpush1.bf16.msra.mxu0 0
    %913 = vmatprep.mubr.bf16.mxu0 0
    %914 = vmatmul.mubr.bf16.gmra.mrb[0].mxu0 %v749
    %v915 = vpop.f32.mrb[0].mxu0
    %v916 = vadd.f32 %v875, %v915
    %v917 = vpop.f32.mrb[0].mxu0
    %v918 = vadd.f32 %v877, %v917
    %v919 = vpop.f32.mrb[0].mxu0
    %v920 = vpop.f32.mrb[0].mxu0
    %921 = vdwg.mxu0
    %v922 = vmax.f32 %v916, 0.0
    %v923 = vmax.f32 %v918, 0.0
    %v924 = vpack.c.bf16 %v922, %v922
    %v925 = vpack.c.bf16 %v923, %v923
    %v926 = vld [vmem:[#allocation4] sm:$0xf]
    %v927 = vld [vmem:[#allocation4 + $0x4] sm:$0xf]
    %v928 = vld [vmem:[#allocation4 + $0x8] sm:$0xf]
    %v929 = vld [vmem:[#allocation4 + $0xc] sm:$0xf]
    %v930 = vld [vmem:[#allocation4 + $0x10] sm:$0xf]
    %v931 = vld [vmem:[#allocation4 + $0x14] sm:$0xf]
    %v932 = vld [vmem:[#allocation4 + $0x18] sm:$0xf]
    %v933 = vld [vmem:[#allocation4 + $0x1c] sm:$0xf]
    %v934 = vld [vmem:[#allocation4 + $0x20] sm:$0xf]
    %v935 = vld [vmem:[#allocation4 + $0x24] sm:$0xf]
    %v936 = vld [vmem:[#allocation4 + $0x28] sm:$0xf]
    %v937 = vld [vmem:[#allocation4 + $0x2c] sm:$0xf]
    %v938 = vld [vmem:[#allocation4 + $0x30] sm:$0xf]
    %v939 = vld [vmem:[#allocation4 + $0x34] sm:$0xf]
    %v940 = vld [vmem:[#allocation4 + $0x38] sm:$0xf]
    %v941 = vld [vmem:[#allocation4 + $0x3c] sm:$0xf]
    %v942 = vld [vmem:[#allocation4 + $0x40] sm:$0xf]
    %v943 = vld [vmem:[#allocation4 + $0x44] sm:$0xf]
    %v944 = vld [vmem:[#allocation4 + $0x48] sm:$0xf]
    %v945 = vld [vmem:[#allocation4 + $0x4c] sm:$0xf]
    %v946 = vld [vmem:[#allocation4 + $0x50] sm:$0xf]
    %v947 = vld [vmem:[#allocation4 + $0x54] sm:$0xf]
    %v948 = vld [vmem:[#allocation4 + $0x58] sm:$0xf]
    %v949 = vld [vmem:[#allocation4 + $0x5c] sm:$0xf]
    %v950 = vld [vmem:[#allocation4 + $0x60] sm:$0xf]
    %v951 = vld [vmem:[#allocation4 + $0x64] sm:$0xf]
    %v952 = vld [vmem:[#allocation4 + $0x68] sm:$0xf]
    %v953 = vld [vmem:[#allocation4 + $0x6c] sm:$0xf]
    %v954 = vld [vmem:[#allocation4 + $0x70] sm:$0xf]
    %v955 = vld [vmem:[#allocation4 + $0x74] sm:$0xf]
    %v956 = vld [vmem:[#allocation4 + $0x78] sm:$0xf]
    %v957 = vld [vmem:[#allocation4 + $0x7c] sm:$0xf]
    %v958 = vld [vmem:[%s4] sm:$0x1]
    %v960 = vlaneseq
    %v961 = vshrl.u32 %v960, 7
    %v962 = vsub.s32 0, %v961
    %v963 = vrot.slane %v958, %v962
    %v997 = vunpack.c.l.b16 %v926
    %v998 = vunpack.c.l.b16 %v927
    %v999 = vunpack.c.l.b16 %v928
    %v1000 = vunpack.c.l.b16 %v929
    %v1001 = vunpack.c.l.b16 %v930
    %v1002 = vunpack.c.l.b16 %v931
    %v1003 = vunpack.c.l.b16 %v932
    %v1004 = vunpack.c.l.b16 %v933
    %v1005 = vunpack.c.l.b16 %v934
    %v1006 = vunpack.c.l.b16 %v935
    %v1007 = vunpack.c.l.b16 %v936
    %v1008 = vunpack.c.l.b16 %v937
    %v1009 = vunpack.c.l.b16 %v938
    %v1010 = vunpack.c.l.b16 %v939
    %v1011 = vunpack.c.l.b16 %v940
    %v1012 = vunpack.c.l.b16 %v941
    %v1013 = vunpack.c.l.b16 %v942
    %v1014 = vunpack.c.l.b16 %v943
    %v1015 = vunpack.c.l.b16 %v944
    %v1016 = vunpack.c.l.b16 %v945
    %v1017 = vunpack.c.l.b16 %v946
    %v1018 = vunpack.c.l.b16 %v947
    %v1019 = vunpack.c.l.b16 %v948
    %v1020 = vunpack.c.l.b16 %v949
    %v1021 = vunpack.c.l.b16 %v950
    %v1022 = vunpack.c.l.b16 %v951
    %v1023 = vunpack.c.l.b16 %v952
    %v1024 = vunpack.c.l.b16 %v953
    %v1025 = vunpack.c.l.b16 %v954
    %v1026 = vunpack.c.l.b16 %v955
    %v1027 = vunpack.c.l.b16 %v956
    %v1028 = vunpack.c.l.b16 %v957
    %v1029 = vpack.c.b16 %v998, %v997
    %v1030 = vpack.c.b16 %v1000, %v999
    %v1031 = vpack.c.b16 %v1002, %v1001
    %v1032 = vpack.c.b16 %v1004, %v1003
    %v1033 = vpack.c.b16 %v1006, %v1005
    %v1034 = vpack.c.b16 %v1008, %v1007
    %v1035 = vpack.c.b16 %v1010, %v1009
    %v1036 = vpack.c.b16 %v1012, %v1011
    %v1037 = vpack.c.b16 %v1014, %v1013
    %v1038 = vpack.c.b16 %v1016, %v1015
    %v1039 = vpack.c.b16 %v1018, %v1017
    %v1040 = vpack.c.b16 %v1020, %v1019
    %v1041 = vpack.c.b16 %v1022, %v1021
    %v1042 = vpack.c.b16 %v1024, %v1023
    %v1043 = vpack.c.b16 %v1026, %v1025
    %v1044 = vpack.c.b16 %v1028, %v1027
    %1061 = vmatprep.subr.bf16.mxu0 0
    %1062 = vmatpush1.bf16.msra.mxu0 %v1029
    %1063 = vmatprep.subr.bf16.mxu0 0
    %1064 = vmatpush1.bf16.msra.mxu0 %v1030
    %1065 = vmatprep.subr.bf16.mxu0 0
    %1066 = vmatpush1.bf16.msra.mxu0 %v1031
    %1067 = vmatprep.subr.bf16.mxu0 0
    %1068 = vmatpush1.bf16.msra.mxu0 %v1032
    %1069 = vmatprep.subr.bf16.mxu0 0
    %1070 = vmatpush1.bf16.msra.mxu0 %v1033
    %1071 = vmatprep.subr.bf16.mxu0 0
    %1072 = vmatpush1.bf16.msra.mxu0 %v1034
    %1073 = vmatprep.subr.bf16.mxu0 0
    %1074 = vmatpush1.bf16.msra.mxu0 %v1035
    %1075 = vmatprep.subr.bf16.mxu0 0
    %1076 = vmatpush1.bf16.msra.mxu0 %v1036
    %1077 = vmatprep.subr.bf16.mxu0 0
    %1078 = vmatpush1.bf16.msra.mxu0 %v1037
    %1079 = vmatprep.subr.bf16.mxu0 0
    %1080 = vmatpush1.bf16.msra.mxu0 %v1038
    %1081 = vmatprep.subr.bf16.mxu0 0
    %1082 = vmatpush1.bf16.msra.mxu0 %v1039
    %1083 = vmatprep.subr.bf16.mxu0 0
    %1084 = vmatpush1.bf16.msra.mxu0 %v1040
    %1085 = vmatprep.subr.bf16.mxu0 0
    %1086 = vmatpush1.bf16.msra.mxu0 %v1041
    %1087 = vmatprep.subr.bf16.mxu0 0
    %1088 = vmatpush1.bf16.msra.mxu0 %v1042
    %1089 = vmatprep.subr.bf16.mxu0 0
    %1090 = vmatpush1.bf16.msra.mxu0 %v1043
    %1091 = vmatprep.subr.bf16.mxu0 0
    %1092 = vmatpush1.bf16.msra.mxu0 %v1044
    %1093 = vmatprep.mubr.bf16.mxu0 %v925
    %1094 = vmatmul.mubr.bf16.gmra.mrb[0].mxu0 %v924
    %v1095 = vpop.f32.mrb[0].mxu0
    %v1096 = vadd.f32 %v963, %v1095
    %v1097 = vpop.f32.mrb[0].mxu0
    %v1098 = vpop.f32.mrb[0].mxu0
    %v1099 = vpop.f32.mrb[0].mxu0
    %1100 = vdwg.mxu0
    %v1101 = vmax.f32 %v1096, 0.0
    %v1102 = vpack.c.bf16 %v1101, %v1101
    %v1103 = vld [vmem:[%s5] sm:$0xf]
    %v1104 = vld [vmem:[%s5 + $0x4] sm:$0xf]
    %v1105 = vld [vmem:[%s5 + $0x8] sm:$0xf]
    %v1106 = vld [vmem:[%s5 + $0xc] sm:$0xf]
    %v1107 = vld [vmem:[%s5 + $0x10] sm:$0xf]
    %v1108 = vld [vmem:[%s5 + $0x14] sm:$0xf]
    %v1109 = vld [vmem:[%s5 + $0x18] sm:$0xf]
    %v1110 = vld [vmem:[%s5 + $0x1c] sm:$0xf]
    %v1111 = vld [vmem:[%s5 + $0x20] sm:$0xf]
    %v1112 = vld [vmem:[%s5 + $0x24] sm:$0xf]
    %v1113 = vld [vmem:[%s5 + $0x28] sm:$0xf]
    %v1114 = vld [vmem:[%s5 + $0x2c] sm:$0xf]
    %v1115 = vld [vmem:[%s5 + $0x30] sm:$0xf]
    %v1116 = vld [vmem:[%s5 + $0x34] sm:$0xf]
    %v1117 = vld [vmem:[%s5 + $0x38] sm:$0xf]
    %v1118 = vld [vmem:[%s5 + $0x3c] sm:$0xf]
    %v1119 = vld [vmem:[%s6] sm:$0x1]
    %v1121 = vlaneseq
    %v1122 = vshrl.u32 %v1121, 7
    %v1123 = vsub.s32 0, %v1122
    %v1124 = vrot.slane %v1119, %v1123
    %v1142 = vunpack.c.l.b16 %v1103
    %v1143 = vunpack.c.l.b16 %v1104
    %v1144 = vunpack.c.l.b16 %v1105
    %v1145 = vunpack.c.l.b16 %v1106
    %v1146 = vunpack.c.l.b16 %v1107
    %v1147 = vunpack.c.l.b16 %v1108
    %v1148 = vunpack.c.l.b16 %v1109
    %v1149 = vunpack.c.l.b16 %v1110
    %v1150 = vunpack.c.l.b16 %v1111
    %v1151 = vunpack.c.l.b16 %v1112
    %v1152 = vunpack.c.l.b16 %v1113
    %v1153 = vunpack.c.l.b16 %v1114
    %v1154 = vunpack.c.l.b16 %v1115
    %v1155 = vunpack.c.l.b16 %v1116
    %v1156 = vunpack.c.l.b16 %v1117
    %v1157 = vunpack.c.l.b16 %v1118
    %v1158 = vpack.c.b16 %v1143, %v1142
    %v1159 = vpack.c.b16 %v1145, %v1144
    %v1160 = vpack.c.b16 %v1147, %v1146
    %v1161 = vpack.c.b16 %v1149, %v1148
    %v1162 = vpack.c.b16 %v1151, %v1150
    %v1163 = vpack.c.b16 %v1153, %v1152
    %v1164 = vpack.c.b16 %v1155, %v1154
    %v1165 = vpack.c.b16 %v1157, %v1156
    %1174 = vmatprep.subr.bf16.mxu0 0
    %1175 = vmatpush1.bf16.msra.mxu0 %v1158
    %1176 = vmatprep.subr.bf16.mxu0 0
    %1177 = vmatpush1.bf16.msra.mxu0 %v1159
    %1178 = vmatprep.subr.bf16.mxu0 0
    %1179 = vmatpush1.bf16.msra.mxu0 %v1160
    %1180 = vmatprep.subr.bf16.mxu0 0
    %1181 = vmatpush1.bf16.msra.mxu0 %v1161
    %1182 = vmatprep.subr.bf16.mxu0 0
    %1183 = vmatpush1.bf16.msra.mxu0 %v1162
    %1184 = vmatprep.subr.bf16.mxu0 0
    %1185 = vmatpush1.bf16.msra.mxu0 %v1163
    %1186 = vmatprep.subr.bf16.mxu0 0
    %1187 = vmatpush1.bf16.msra.mxu0 %v1164
    %1188 = vmatprep.subr.bf16.mxu0 0
    %1189 = vmatpush1.bf16.msra.mxu0 %v1165
    %1190 = vmatprep.subr.bf16.mxu0 0
    %1191 = vmatpush1.bf16.msra.mxu0 0
    %1192 = vmatprep.subr.bf16.mxu0 0
    %1193 = vmatpush1.bf16.msra.mxu0 0
    %1194 = vmatprep.subr.bf16.mxu0 0
    %1195 = vmatpush1.bf16.msra.mxu0 0
    %1196 = vmatprep.subr.bf16.mxu0 0
    %1197 = vmatpush1.bf16.msra.mxu0 0
    %1198 = vmatprep.subr.bf16.mxu0 0
    %1199 = vmatpush1.bf16.msra.mxu0 0
    %1200 = vmatprep.subr.bf16.mxu0 0
    %1201 = vmatpush1.bf16.msra.mxu0 0
    %1202 = vmatprep.subr.bf16.mxu0 0
    %1203 = vmatpush1.bf16.msra.mxu0 0
    %1204 = vmatprep.subr.bf16.mxu0 0
    %1205 = vmatpush1.bf16.msra.mxu0 0
    %1206 = vmatprep.mubr.bf16.mxu0 0
    %1207 = vmatmul.mubr.bf16.gmra.mrb[0].mxu0 %v1102
    %v1208 = vpop.f32.mrb[0].mxu0
    %v1209 = vadd.f32 %v1124, %v1208
    %v1210 = vpop.f32.mrb[0].mxu0
    %v1211 = vpop.f32.mrb[0].mxu0
    %v1212 = vpop.f32.mrb[0].mxu0
    %1213 = vdwg.mxu0
    %vm1214 = vcmask 15360
    %1215 = vst.msk [vmem:[%s7] sm:$0xff] %vm1214, %v1209
    // Predicated region
    $region38: #{tpu_custom_call.1} parent=1 // pred_check
      _
    $region39: #{tpu_custom_call.1} parent=1 // pred_check_branch
      %1217 = sbr.rel (0) target = $region41
    $region40: #{tpu_custom_call.1} parent=1 // pred_region
      _
    $region41: #{tpu_custom_call.1} parent=1 // pred_fallthru
      _
    // Predicated region
    $region42: #{tpu_custom_call.1} parent=1 // pred_check
      _
    $region43: #{tpu_custom_call.1} parent=1 // pred_check_branch
      %1219 = sbr.rel (0) target = $region45
    $region44: #{tpu_custom_call.1} parent=1 // pred_region
      _
    $region45: #{tpu_custom_call.1} parent=1 // pred_fallthru
      _
    %1220 = vsyncpa [#allocation3], 1
    %1221 = vsyncpa [#allocation5], 1

</llo_original>
